<compile_context>
chip_gen: v5e
topology: v5e:2x2
jax: 0.10.0
libtpu: 0.0.40
codegen_flags: <defaults>
</compile_context>

<pallas_src>
import functools
import math

import numpy as np

import jax
import jax.numpy as jnp
from jax.experimental import pallas as pl
from jax.experimental.pallas import tpu as pltpu


def _cdiv(a, b):
    return -(-a // b)


def _round_up(x, m):
    return _cdiv(x, m) * m


def _sublane(itemsize):
    # Sublane packing granularity: 8 for 4-byte, 16 for 2-byte, 32 for 1-byte.
    return max(8, 32 // max(int(itemsize), 1))


def _interp_matrix_np(out_size: int, in_size: int) -> np.ndarray:
    """Dense (out_size, in_size) 1-D linear-interp matrix, align_corners=True.

    Built on the host with numpy so no scatter ops ever run on device.
    """
    if out_size == 1:
        src = np.zeros((1,), dtype=np.float64)
    else:
        src = np.arange(out_size, dtype=np.float64) * (
            (in_size - 1) / (out_size - 1)
        )
    lo = np.clip(np.floor(src).astype(np.int64), 0, in_size - 1)
    hi = np.minimum(lo + 1, in_size - 1)
    frac = (src - lo).astype(np.float32)
    w = np.zeros((out_size, in_size), dtype=np.float32)
    rows = np.arange(out_size)
    np.add.at(w, (rows, lo), 1.0 - frac)
    np.add.at(w, (rows, hi), frac)
    return w


def _resolve_out_size(in_hw, scale, size):
    h_in, w_in = in_hw
    if size is not None:
        if isinstance(size, (tuple, list)):
            return int(size[0]), int(size[1])
        return int(size), int(size)
    if scale is None:
        raise ValueError("Interp: either `scale` or `size` must be given")
    if isinstance(scale, (tuple, list)):
        sh, sw = float(scale[0]), float(scale[1])
    else:
        sh = sw = float(scale)
    # PyTorch: output_size = floor(input_size * scale_factor), double precision.
    return int(math.floor(h_in * sh)), int(math.floor(w_in * sw))


def _resolve_compute_dtype(x_dtype, override):
    if override is not None:
        return jnp.dtype(override)
    if jnp.dtype(x_dtype) == jnp.dtype(jnp.float32):
        # Keep full f32 precision (weights, intermediates, MXU accumulation)
        # when the input is f32 -- matches PyTorch's f32 bilinear closely.
        return jnp.dtype(jnp.float32)
    return jnp.dtype(jnp.bfloat16)


def _vmem_capacity_bytes():
    """Physical VMEM per TensorCore; conservative fallback if the query fails."""
    try:
        info = pltpu.get_tpu_info()
        cap = int(getattr(info, "vmem_capacity_bytes", 0))
        if cap >= (8 << 20):
            return cap
    except Exception:
        pass
    return 64 * 1024 * 1024  # safe for every generation (v7x has 64 MiB/TC)


def _plane_vmem_bytes(h_in, w_in, h_out, w_out, x_item, c_item):
    """Per-plane VMEM footprint with lane/sublane padding included."""
    lane = 128
    sub_x = _sublane(x_item)
    sub_c = _sublane(c_item)
    # Double-buffered pipeline blocks (input + output, array dtype).
    in_blk = _round_up(h_in, sub_x) * _round_up(w_in, lane) * x_item
    out_blk = _round_up(h_out, sub_x) * _round_up(w_out, lane) * x_item
    # Compute-dtype copy of the input plane (cast before the first matmul).
    x_cast = _round_up(h_in, sub_c) * _round_up(w_in, lane) * c_item
    # Intermediate between the two matmuls: f32 result + compute-dtype recast
    # (take the worse of the two contraction orders).
    inter_w = (_round_up(h_in, 8) * _round_up(w_out, lane) * 4
               + _round_up(h_in, sub_c) * _round_up(w_out, lane) * c_item)
    inter_h = (_round_up(h_out, 8) * _round_up(w_in, lane) * 4
               + _round_up(h_out, sub_c) * _round_up(w_in, lane) * c_item)
    # f32 result of the second matmul before the cast + store.
    res = _round_up(h_out, 8) * _round_up(w_out, lane) * 4
    return 2 * (in_blk + out_blk) + x_cast + max(inter_w, inter_h) + res


def _largest_divisor_le(n, cap):
    for d in range(min(n, cap), 0, -1):
        if n % d == 0:
            return d
    return 1


def _choose_plane_block(nc, h_in, w_in, h_out, w_out, x_item, c_item,
                        budget, multi_core):
    """How many (H, W) planes each grid step processes."""
    lane = 128
    sub_c = _sublane(c_item)
    per_plane = _plane_vmem_bytes(h_in, w_in, h_out, w_out, x_item, c_item)
    weights = 2 * c_item * (_round_up(h_out, sub_c) * _round_up(h_in, lane)
                            + _round_up(w_in, sub_c) * _round_up(w_out, lane))
    fixed = weights + (2 << 20)            # slack for compiler temporaries
    p_vmem = max(1, (budget - fixed) // max(per_plane, 1))
    # Enough planes per step to amortize the ~0.35 us per-step overhead and to
    # fill the stacked matmul's M dim; capped to keep the unrolled loop sane.
    p_target = max(8, _cdiv(512, max(1, min(h_in, h_out))))
    p = int(max(1, min(nc, p_vmem, p_target, 64)))
    if multi_core and nc > 1:
        # v7x: 2 TensorCores share the "parallel" grid axis -> prefer an even
        # number (>= 2) of grid steps so neither core idles.
        g = max(2, _cdiv(nc, p))
        if g % 2:
            g += 1
        p = max(1, _cdiv(nc, g))
    # Prefer a block size that divides nc so no grid step runs on masked planes
    # (only if it stays close to the target).
    d = _largest_divisor_le(nc, p)
    if d >= (3 * p + 3) // 4:
        p = d
    return int(p)


# Fixed per-matmul issue/pipeline-fill cost, in MAC-equivalents (~64 MXU cycles).
_MM_OVERHEAD = 64 * 256 * 256


def _mm_cost(m, k, n, sub):
    """MXU-tile-rounded matmul cost: lanes to 128, sublanes/K to `sub`."""
    return _round_up(m, sub) * _round_up(k, sub) * _round_up(n, 128) + _MM_OVERHEAD


def _choose_order(p, h_in, w_in, h_out, w_out, x_item, c_item):
    sub_c = _sublane(c_item)
    sub = max(sub_c, _sublane(x_item))
    costs = {
        "w_first": p * (_mm_cost(h_in, w_in, w_out, sub_c)
                        + _mm_cost(h_out, h_in, w_out, sub_c)),
        "h_first": p * (_mm_cost(h_out, h_in, w_in, sub_c)
                        + _mm_cost(h_out, w_in, w_out, sub_c)),
    }
    # The stacked W-first path is only offered when the (p, h_in, w) ->
    # (p*h_in, w) reshape is layout-free (h_in a multiple of the sublane count).
    if h_in % sub == 0:
        costs["w_first_stacked"] = (_mm_cost(p * h_in, w_in, w_out, sub_c)
                                    + p * _mm_cost(h_out, h_in, w_out, sub_c))
    return min(costs, key=costs.get)


def _interp_kernel(wh_ref, wwt_ref, x_ref, o_ref, *, p, h_in, w_in, h_out, w_out,
                   order, compute_dtype):
    """Bilinearly resample a block of P (H_in, W_in) planes.

    All code paths are relayout-free: planes are only indexed along the major
    (plane) axis of the refs/values, so no cross-lane slices, concatenates or
    transposes are emitted inside the kernel.
    """
    wh = wh_ref[...]      # (H_out, H_in)  compute dtype
    wwt = wwt_ref[...]    # (W_in, W_out)  compute dtype

    if order == "w_first_stacked":
        # W-resize as ONE MXU matmul with all P planes flattened onto the M dim
        # (layout-free reshape), then a per-plane H-resize straight into the
        # output block (major-dim indexed stores only).
        xf = x_ref[...].astype(compute_dtype).reshape(p * h_in, w_in)
        t = jnp.dot(xf, wwt, preferred_element_type=jnp.float32)        # (P*H_in, W_out)
        t = t.astype(compute_dtype).reshape(p, h_in, w_out)
        for i in range(p):
            r = jnp.dot(wh, t[i], preferred_element_type=jnp.float32)   # (H_out, W_out)
            o_ref[i] = r.astype(o_ref.dtype)
    elif order == "w_first":
        for i in range(p):
            xi = x_ref[i].astype(compute_dtype)                          # (H_in, W_in)
            t = jnp.dot(xi, wwt, preferred_element_type=jnp.float32)     # (H_in, W_out)
            r = jnp.dot(wh, t.astype(compute_dtype),
                        preferred_element_type=jnp.float32)              # (H_out, W_out)
            o_ref[i] = r.astype(o_ref.dtype)
    else:  # "h_first"
        for i in range(p):
            xi = x_ref[i].astype(compute_dtype)                          # (H_in, W_in)
            t = jnp.dot(wh, xi, preferred_element_type=jnp.float32)      # (H_out, W_in)
            r = jnp.dot(t.astype(compute_dtype), wwt,
                        preferred_element_type=jnp.float32)              # (H_out, W_out)
            o_ref[i] = r.astype(o_ref.dtype)


class Interp:
    """JAX/Pallas equivalent of the PyTorch Interp module (bilinear, align_corners=True)."""

    def __init__(self, scale=None, size=None, compute_dtype=None):
        self.scale = scale
        self.size = size
        # None = auto: f32 inputs run an all-f32 path, bf16 inputs run bf16.
        self.compute_dtype = compute_dtype
        self._weight_cache = {}

    def __call__(self, x):
        return self.forward(x)

    def _weights(self, h_in, w_in, h_out, w_out, cdt):
        key = (h_in, w_in, h_out, w_out, str(cdt))
        if key not in self._weight_cache:
            wh = _interp_matrix_np(h_out, h_in)                              # (H_out, H_in)
            wwt = np.ascontiguousarray(_interp_matrix_np(w_out, w_in).T)     # (W_in, W_out)
            self._weight_cache[key] = (jnp.asarray(wh, dtype=cdt),
                                       jnp.asarray(wwt, dtype=cdt))
        return self._weight_cache[key]

    def forward(self, x):
        # x: (N, C, H_in, W_in) -- NCHW, same as PyTorch
        n, c, h_in, w_in = x.shape
        h_out, w_out = _resolve_out_size((h_in, w_in), self.scale, self.size)
        if (h_out, w_out) == (h_in, w_in):
            # align_corners=True bilinear at identical size is an exact identity.
            return x

        cdt = _resolve_compute_dtype(x.dtype, self.compute_dtype)
        wh, wwt = self._weights(h_in, w_in, h_out, w_out, cdt)

        nc = n * c
        x_item = jnp.dtype(x.dtype).itemsize
        c_item = cdt.itemsize

        cap = _vmem_capacity_bytes()
        # Generation-aware budgets: ~45% of physical VMEM for the accounted
        # blocks/intermediates, ~70% as the scoped limit (headroom below
        # v7x's 64 MiB; most of the 128 MiB on v5e/v6e).
        budget = int(cap * 0.45)
        vmem_limit = int(cap * 0.70)
        # v7x (64 MiB VMEM / TensorCore) has 2 TCs per chip; v5e/v6e have 1.
        multi_core = cap < (96 << 20)

        p = _choose_plane_block(nc, h_in, w_in, h_out, w_out, x_item, c_item,
                                budget, multi_core)
        g = _cdiv(nc, p)  # ragged tail handled by Pallas' masked edge block
        order = _choose_order(p, h_in, w_in, h_out, w_out, x_item, c_item)

        planes = x.reshape(nc, h_in, w_in)   # free reshape, no extra HBM pass

        kernel = functools.partial(
            _interp_kernel, p=p, h_in=h_in, w_in=w_in, h_out=h_out, w_out=w_out,
            order=order, compute_dtype=cdt)

        out = pl.pallas_call(
            kernel,
            out_shape=jax.ShapeDtypeStruct((nc, h_out, w_out), x.dtype),
            grid_spec=pltpu.PrefetchScalarGridSpec(
                num_scalar_prefetch=0,
                grid=(g,),
                in_specs=[
                    pl.BlockSpec((h_out, h_in), lambda b: (0, 0)),       # Wh
                    pl.BlockSpec((w_in, w_out), lambda b: (0, 0)),       # Ww^T
                    pl.BlockSpec((p, h_in, w_in), lambda b: (b, 0, 0)),  # plane block
                ],
                out_specs=pl.BlockSpec((p, h_out, w_out), lambda b: (b, 0, 0)),
            ),
            compiler_params=pltpu.CompilerParams(
                dimension_semantics=("parallel",),
                vmem_limit_bytes=vmem_limit,
            ),
        )(wh, wwt, planes)

        return out.reshape(n, c, h_out, w_out)


if __name__ == "__main__":
    key = jax.random.PRNGKey(0)
    k0, k1 = jax.random.split(key, 2)
    # Small NCHW input consistent with the module's forward pass.
    x = jax.random.normal(k0, (2, 4, 16, 16), dtype=jnp.float32)

    def reference(x_in, h_out, w_out):
        # Pure-JAX f32 reference using the same separable formulation.
        _, _, h_in, w_in = x_in.shape
        wh = jnp.asarray(_interp_matrix_np(h_out, h_in))   # (H_out, H_in)
        ww = jnp.asarray(_interp_matrix_np(w_out, w_in))   # (W_out, W_in)
        return jnp.einsum("oh,nchw,vw->ncov", wh, x_in.astype(jnp.float32), ww,
                          precision=jax.lax.Precision.HIGHEST)

    def check(mod, x_in, expect_shape, atol, rtol):
        y = jax.block_until_ready(mod(x_in))
        assert y.shape == expect_shape, (y.shape, expect_shape)
        ref = reference(x_in.astype(jnp.float32), expect_shape[2], expect_shape[3])
        err = float(jnp.max(jnp.abs(y.astype(jnp.float32) - ref)))
        assert jnp.allclose(y.astype(jnp.float32), ref, atol=atol, rtol=rtol), (
            err, expect_shape)

    # f32 inputs -> f32 compute path (higher-precision path).
    check(Interp(scale=2.0), x, (2, 4, 32, 32), 0.05, 0.05)        # symmetric upsample
    check(Interp(size=(24, 12)), x, (2, 4, 24, 12), 0.05, 0.05)    # explicit size
    check(Interp(size=(12, 24)), x, (2, 4, 12, 24), 0.05, 0.05)    # asymmetric
    check(Interp(size=(16, 128)), x, (2, 4, 16, 128), 0.05, 0.05)  # wide output
    check(Interp(size=(160, 128)), x, (2, 4, 160, 128), 0.05, 0.05)  # wide + tall

    # Identical size: exact identity, no kernel needed.
    y_id = jax.block_until_ready(Interp(size=(16, 16))(x))
    assert y_id.shape == (2, 4, 16, 16) and bool(jnp.array_equal(y_id, x))

    # Explicit bf16 compute override (fast path), looser tolerance.
    check(Interp(scale=2.0, compute_dtype=jnp.bfloat16), x, (2, 4, 32, 32), 0.1, 0.1)

    # bf16 input -> bf16 compute, output stays bf16.
    x_bf16 = x.astype(jnp.bfloat16)
    y_bf = jax.block_until_ready(Interp(scale=2.0)(x_bf16))
    assert y_bf.dtype == jnp.bfloat16 and y_bf.shape == (2, 4, 32, 32)
    ref_bf = reference(x_bf16.astype(jnp.float32), 32, 32)
    assert jnp.allclose(y_bf.astype(jnp.float32), ref_bf, atol=0.1, rtol=0.1)

    # Plane count that may not divide the chosen block: exercises the masked
    # edge block (no jnp.pad, no extra HBM pass).
    x_big = jax.random.normal(k1, (2, 34, 16, 16), dtype=jnp.float32)
    check(Interp(scale=2.0), x_big, (2, 34, 32, 32), 0.05, 0.05)

    print("KERNEL_OK")
</pallas_src>

<mosaic_0001>
module attributes {stable_mosaic.version = 11 : i64} {
  func.func @_interp_kernel(%arg0: i32, %arg1: memref<32x16xf32, #tpu.memory_space<vmem>>, %arg2: memref<16x32xf32, #tpu.memory_space<vmem>>, %arg3: memref<4x16x16xf32, #tpu.memory_space<vmem>>, %arg4: memref<4x32x32xf32, #tpu.memory_space<vmem>>) attributes {dimension_semantics = [#tpu.dimension_semantics<parallel>], iteration_bounds = array<i64: 2>, scalar_prefetch = 0 : i64, scratch_operands = 0 : i64, tpu.core_type = #tpu.core_type<tc>, window_params = [{pipeline_mode = #tpu.pipeline_mode<synchronous>, transform_indices = @transform_0, window_bounds = array<i64: 32, 16>}, {pipeline_mode = #tpu.pipeline_mode<synchronous>, transform_indices = @transform_1, window_bounds = array<i64: 16, 32>}, {transform_indices = @transform_2, window_bounds = array<i64: 4, 16, 16>}, {transform_indices = @transform_3, window_bounds = array<i64: 4, 32, 32>}]} {
    %c0 = arith.constant 0 : index
    %c0_0 = arith.constant 0 : index
    %0 = vector.load %arg1[%c0, %c0_0] : memref<32x16xf32, #tpu.memory_space<vmem>>, vector<32x16xf32>
    %c0_1 = arith.constant 0 : index
    %c0_2 = arith.constant 0 : index
    %1 = vector.load %arg2[%c0_1, %c0_2] : memref<16x32xf32, #tpu.memory_space<vmem>>, vector<16x32xf32>
    %c0_3 = arith.constant 0 : index
    %c0_4 = arith.constant 0 : index
    %c0_5 = arith.constant 0 : index
    %2 = vector.load %arg3[%c0_3, %c0_4, %c0_5] : memref<4x16x16xf32, #tpu.memory_space<vmem>>, vector<4x16x16xf32>
    %3 = vector.shape_cast %2 : vector<4x16x16xf32> to vector<64x16xf32>
    %cst = arith.constant dense<0.000000e+00> : vector<64x32xf32>
    %4 = tpu.matmul %3, %1, %cst {dimension_numbers = #tpu.dot_dimension_numbers<[1], [0], [0], [1], [0, 0, 1, 1], [], []>} : vector<64x16xf32>, vector<16x32xf32>, vector<64x32xf32> -> vector<64x32xf32>
    %5 = vector.shape_cast %4 : vector<64x32xf32> to vector<4x16x32xf32>
    %6 = vector.extract_strided_slice %5 {offsets = [0, 0, 0], sizes = [1, 16, 32], strides = [1, 1, 1]} : vector<4x16x32xf32> to vector<1x16x32xf32>
    %7 = vector.shape_cast %6 : vector<1x16x32xf32> to vector<16x32xf32>
    %cst_6 = arith.constant dense<0.000000e+00> : vector<32x32xf32>
    %8 = tpu.matmul %0, %7, %cst_6 {dimension_numbers = #tpu.dot_dimension_numbers<[1], [0], [0], [1], [0, 0, 1, 1], [], []>} : vector<32x16xf32>, vector<16x32xf32>, vector<32x32xf32> -> vector<32x32xf32>
    %c0_7 = arith.constant 0 : index
    %c0_8 = arith.constant 0 : index
    %c0_9 = arith.constant 0 : index
    %9 = vector.load %arg4[%c0_7, %c0_8, %c0_9] : memref<4x32x32xf32, #tpu.memory_space<vmem>>, vector<1x32x32xf32>
    %10 = vector.shape_cast %9 : vector<1x32x32xf32> to vector<32x32xf32>
    %11 = vector.shape_cast %8 : vector<32x32xf32> to vector<1x32x32xf32>
    tpu.vector_store %arg4[%c0_7, %c0_8, %c0_9], %11 {strides = array<i32>} : memref<4x32x32xf32, #tpu.memory_space<vmem>>, vector<1x32x32xf32>,
    %12 = vector.extract_strided_slice %5 {offsets = [1, 0, 0], sizes = [1, 16, 32], strides = [1, 1, 1]} : vector<4x16x32xf32> to vector<1x16x32xf32>
    %13 = vector.shape_cast %12 : vector<1x16x32xf32> to vector<16x32xf32>
    %cst_10 = arith.constant dense<0.000000e+00> : vector<32x32xf32>
    %14 = tpu.matmul %0, %13, %cst_10 {dimension_numbers = #tpu.dot_dimension_numbers<[1], [0], [0], [1], [0, 0, 1, 1], [], []>} : vector<32x16xf32>, vector<16x32xf32>, vector<32x32xf32> -> vector<32x32xf32>
    %c1 = arith.constant 1 : index
    %c0_11 = arith.constant 0 : index
    %c0_12 = arith.constant 0 : index
    %15 = vector.load %arg4[%c1, %c0_11, %c0_12] : memref<4x32x32xf32, #tpu.memory_space<vmem>>, vector<1x32x32xf32>
    %16 = vector.shape_cast %15 : vector<1x32x32xf32> to vector<32x32xf32>
    %17 = vector.shape_cast %14 : vector<32x32xf32> to vector<1x32x32xf32>
    tpu.vector_store %arg4[%c1, %c0_11, %c0_12], %17 {strides = array<i32>} : memref<4x32x32xf32, #tpu.memory_space<vmem>>, vector<1x32x32xf32>,
    %18 = vector.extract_strided_slice %5 {offsets = [2, 0, 0], sizes = [1, 16, 32], strides = [1, 1, 1]} : vector<4x16x32xf32> to vector<1x16x32xf32>
    %19 = vector.shape_cast %18 : vector<1x16x32xf32> to vector<16x32xf32>
    %cst_13 = arith.constant dense<0.000000e+00> : vector<32x32xf32>
    %20 = tpu.matmul %0, %19, %cst_13 {dimension_numbers = #tpu.dot_dimension_numbers<[1], [0], [0], [1], [0, 0, 1, 1], [], []>} : vector<32x16xf32>, vector<16x32xf32>, vector<32x32xf32> -> vector<32x32xf32>
    %c2 = arith.constant 2 : index
    %c0_14 = arith.constant 0 : index
    %c0_15 = arith.constant 0 : index
    %21 = vector.load %arg4[%c2, %c0_14, %c0_15] : memref<4x32x32xf32, #tpu.memory_space<vmem>>, vector<1x32x32xf32>
    %22 = vector.shape_cast %21 : vector<1x32x32xf32> to vector<32x32xf32>
    %23 = vector.shape_cast %20 : vector<32x32xf32> to vector<1x32x32xf32>
    tpu.vector_store %arg4[%c2, %c0_14, %c0_15], %23 {strides = array<i32>} : memref<4x32x32xf32, #tpu.memory_space<vmem>>, vector<1x32x32xf32>,
    %24 = vector.extract_strided_slice %5 {offsets = [3, 0, 0], sizes = [1, 16, 32], strides = [1, 1, 1]} : vector<4x16x32xf32> to vector<1x16x32xf32>
    %25 = vector.shape_cast %24 : vector<1x16x32xf32> to vector<16x32xf32>
    %cst_16 = arith.constant dense<0.000000e+00> : vector<32x32xf32>
    %26 = tpu.matmul %0, %25, %cst_16 {dimension_numbers = #tpu.dot_dimension_numbers<[1], [0], [0], [1], [0, 0, 1, 1], [], []>} : vector<32x16xf32>, vector<16x32xf32>, vector<32x32xf32> -> vector<32x32xf32>
    %c3 = arith.constant 3 : index
    %c0_17 = arith.constant 0 : index
    %c0_18 = arith.constant 0 : index
    %27 = vector.load %arg4[%c3, %c0_17, %c0_18] : memref<4x32x32xf32, #tpu.memory_space<vmem>>, vector<1x32x32xf32>
    %28 = vector.shape_cast %27 : vector<1x32x32xf32> to vector<32x32xf32>
    %29 = vector.shape_cast %26 : vector<32x32xf32> to vector<1x32x32xf32>
    tpu.vector_store %arg4[%c3, %c0_17, %c0_18], %29 {strides = array<i32>} : memref<4x32x32xf32, #tpu.memory_space<vmem>>, vector<1x32x32xf32>,
    return
  }
  func.func @transform_0(%arg0: i32) -> (i32, i32) {
    %c0_i32 = arith.constant 0 : i32
    %c0_i32_0 = arith.constant 0 : i32
    %c0_i32_1 = arith.constant 0 : i32
    return %c0_i32, %c0_i32_0 : i32, i32
  }
  func.func @transform_1(%arg0: i32) -> (i32, i32) {
    %c0_i32 = arith.constant 0 : i32
    %c0_i32_0 = arith.constant 0 : i32
    %c0_i32_1 = arith.constant 0 : i32
    return %c0_i32, %c0_i32_0 : i32, i32
  }
  func.func @transform_2(%arg0: i32) -> (i32, i32, i32) {
    %c0_i32 = arith.constant 0 : i32
    %c0_i32_0 = arith.constant 0 : i32
    %c0_i32_1 = arith.constant 0 : i32
    return %arg0, %c0_i32, %c0_i32_0 : i32, i32, i32
  }
  func.func @transform_3(%arg0: i32) -> (i32, i32, i32) {
    %c0_i32 = arith.constant 0 : i32
    %c0_i32_0 = arith.constant 0 : i32
    %c0_i32_1 = arith.constant 0 : i32
    return %arg0, %c0_i32, %c0_i32_0 : i32, i32, i32
  }
}

</mosaic_0001>

<llo_original>
// kernel: tpu_custom_call.1
$region0: #{tpu_custom_call.1}
  #allocation0 [shape = 'u32[]', space=smem, size = 0x4, offset = 0x4, fixed_abs, tag = 'smem constant byte address 0x4 - core index']
  #allocation1 [shape = 'u32[72,128]{1,0:T(1,128)}', space=vmem, size = 0x9000, scoped, tag = 'internal scratch']
  %s0 = inlined_call_operand.vmem [shape: f32[32,16], index: 0, kind: input, shape index: {}]
  %s1 = inlined_call_operand.vmem [shape: f32[16,32], index: 1, kind: input, shape index: {}]
  %s2 = inlined_call_operand.hbm [shape: f32[8,16,16], index: 2, kind: input, shape index: {}]
  %s3 = inlined_call_operand.hbm [shape: f32[8,32,32], index: 3, kind: output, shape index: {}]
  %s4 = sld [smem:[#allocation0]]
  $region49: #{tpu_custom_call.1} parent=0
    _
  %s6 = ssub.s32 1, %s4
  %s7 = scalar_select 0, %s6, %s4
  $region1: #{tpu_custom_call.1} parent=0
    #allocation2 [shape = 'u8[65536]{0}', space=vmem, size = 0x10000, scoped, tag = 'input window, operand 2']
    #allocation3 [shape = 's32[2]{0}', space=sflag, size = 0x8, scoped, tag = 'scoped memory for tpu_custom_call.1']
    #allocation4 [shape = 's32[2]{0}', space=sflag, size = 0x8, scoped, tag = 'scoped memory for tpu_custom_call.1']
    #allocation5 [shape = 'u8[131072]{0}', space=vmem, size = 0x20000, scoped, tag = 'output window, operand 0']
    %8 = vsyncpa [#allocation3], 0
    %s9 = scalar_lea.sflag [#allocation3], 1
    %10 = vsyncpa %s9, 0
    %11 = vsyncpa [#allocation4], 0
    %s12 = scalar_lea.sflag [#allocation4], 1
    %13 = vsyncpa %s12, 0
    loop: start=0, step=1, limit=4
    $region2: #{tpu_custom_call.1} parent=1 // loop_pre_header
      _
    $region3: #{tpu_custom_call.1} parent=1 // loop_header
      %s15 = sphi 0, %s19
      %p16 = scmp.ge.s32.totalorder %s15, 4
      %s23 = sphi 0, %s23
      %s25 = sphi 0, %s23
      %s26 = sphi 0, %s25
      %s40 = sphi 0, %s26
      %s44 = sphi 0, %s44
      %s46 = sphi 0, %s44
      %s47 = sphi 0, %s46
      %s61 = sphi 0, %s47
      %s67 = sphi 0, %s69
      %s70 = sphi 0, %s67
      %s71 = sphi 0, %s70
      %s87 = sphi 0, %s71
      %s93 = sphi 0, %s95
      %s96 = sphi 0, %s93
      %s97 = sphi 0, %s96
      %s113 = sphi 0, %s97
    $region4: #{tpu_custom_call.1} parent=1 // loop_header_branch
      %18 = sbr.rel (%p16) target = $region8
    $region5: #{tpu_custom_call.1} parent=1 // loop_body
      %s20 = ssub.s32 %s15, 1
      %s21 = ssub.s32 %s15, 2
      %s22 = sadd.s32 %s15, 1
      %s24 = sadd.s32 %s23, 1
      %p27 = scmp.eq.s32.totalorder %s15, 1
      %p28 = scmp.ne.s32.totalorder %s23, %s25
      %p29 = scmp.eq.s32.totalorder %s15, 0
      %p30 = por %p28, %p29
      %p31 = scmp.ne.s32.totalorder %s23, %s25
      %p32 = scmp.eq.s32.totalorder %s20, 1
      %p33 = por %p31, %p32
      %p34 = scmp.ne.s32.totalorder %s25, %s26
      %p35 = scmp.eq.s32.totalorder %s20, 0
      %p36 = por %p34, %p35
      %p37 = scmp.ne.s32.totalorder %s25, %s26
      %p38 = scmp.eq.s32.totalorder %s21, 1
      %p39 = por %p37, %p38
      %p41 = scmp.ne.s32.totalorder %s26, %s40
      %p42 = scmp.eq.s32.totalorder %s21, 0
      %p43 = por %p41, %p42
      %s45 = sadd.s32 %s44, 1
      %p48 = scmp.eq.s32.totalorder %s15, 1
      %p49 = scmp.ne.s32.totalorder %s44, %s46
      %p50 = scmp.eq.s32.totalorder %s15, 0
      %p51 = por %p49, %p50
      %p52 = scmp.ne.s32.totalorder %s44, %s46
      %p53 = scmp.eq.s32.totalorder %s20, 1
      %p54 = por %p52, %p53
      %p55 = scmp.ne.s32.totalorder %s46, %s47
      %p56 = scmp.eq.s32.totalorder %s20, 0
      %p57 = por %p55, %p56
      %p58 = scmp.ne.s32.totalorder %s46, %s47
      %p59 = scmp.eq.s32.totalorder %s21, 1
      %p60 = por %p58, %p59
      %p62 = scmp.ne.s32.totalorder %s47, %s61
      %p63 = scmp.eq.s32.totalorder %s21, 0
      %p64 = por %p62, %p63
      %s65 = ssub.s32 %s15, %s22
      %p66 = scmp.eq.s32.totalorder %s65, 0
      %s68 = sadd.s32 %s67, 1
      %s69 = scalar_select %p66, %s67, %s68
      %p72 = pneg %p66
      %p73 = scmp.eq.s32.totalorder %s15, 1
      %p74 = por %p72, %p73
      %p75 = scmp.ne.s32.totalorder %s67, %s70
      %p76 = scmp.eq.s32.totalorder %s15, 0
      %p77 = por %p75, %p76
      %p78 = scmp.ne.s32.totalorder %s67, %s70
      %p79 = scmp.eq.s32.totalorder %s20, 1
      %p80 = por %p78, %p79
      %p81 = scmp.ne.s32.totalorder %s70, %s71
      %p82 = scmp.eq.s32.totalorder %s20, 0
      %p83 = por %p81, %p82
      %p84 = scmp.ne.s32.totalorder %s70, %s71
      %p85 = scmp.eq.s32.totalorder %s21, 1
      %p86 = por %p84, %p85
      %p88 = scmp.ne.s32.totalorder %s71, %s87
      %p89 = scmp.eq.s32.totalorder %s21, 0
      %p90 = por %p88, %p89
      %s91 = ssub.s32 %s15, %s22
      %p92 = scmp.eq.s32.totalorder %s91, 0
      %s94 = sadd.s32 %s93, 1
      %s95 = scalar_select %p92, %s93, %s94
      %p98 = pneg %p92
      %p99 = scmp.eq.s32.totalorder %s15, 1
      %p100 = por %p98, %p99
      %p101 = scmp.ne.s32.totalorder %s93, %s96
      %p102 = scmp.eq.s32.totalorder %s15, 0
      %p103 = por %p101, %p102
      %p104 = scmp.ne.s32.totalorder %s93, %s96
      %p105 = scmp.eq.s32.totalorder %s20, 1
      %p106 = por %p104, %p105
      %p107 = scmp.ne.s32.totalorder %s96, %s97
      %p108 = scmp.eq.s32.totalorder %s20, 0
      %p109 = por %p107, %p108
      %p110 = scmp.ne.s32.totalorder %s96, %s97
      %p111 = scmp.eq.s32.totalorder %s21, 1
      %p112 = por %p110, %p111
      %p114 = scmp.ne.s32.totalorder %s97, %s113
      %p115 = scmp.eq.s32.totalorder %s21, 0
      %p116 = por %p114, %p115
      %p117 = scmp.le.s32.totalorder 1, %s15
      %p118 = scmp.lt.s32.totalorder %s15, 3
      %p119 = pnand %p117, %p118
      %p120 = pneg %p119
      // Predicated region
      $region9: #{tpu_custom_call.1} parent=5 // pred_check
        _
      $region10: #{tpu_custom_call.1} parent=5 // pred_check_branch
        %122 = sbr.rel (%p119) target = $region12
      $region11: #{tpu_custom_call.1} parent=5 // pred_region
        %s123 = ssub.s32 %s15, 1
        // Predicated region
        $region13: #{tpu_custom_call.1} parent=11 // pred_check
          %p124 = pneg %p36
        $region14: #{tpu_custom_call.1} parent=11 // pred_check_branch
          %126 = sbr.rel (%p124) target = $region16
        $region15: #{tpu_custom_call.1} parent=11 // pred_region
          _
        $region16: #{tpu_custom_call.1} parent=11 // pred_fallthru
          _
        // Predicated region
        $region17: #{tpu_custom_call.1} parent=11 // pred_check
          %p127 = pneg %p57
        $region18: #{tpu_custom_call.1} parent=11 // pred_check_branch
          %129 = sbr.rel (%p127) target = $region20
        $region19: #{tpu_custom_call.1} parent=11 // pred_region
          _
        $region20: #{tpu_custom_call.1} parent=11 // pred_fallthru
          _
      $region12: #{tpu_custom_call.1} parent=5 // pred_fallthru
        _
      %p130 = scmp.lt.s32.totalorder %s15, 2
      // Predicated region
      $region21: #{tpu_custom_call.1} parent=5 // pred_check
        %p131 = pneg %p130
      $region22: #{tpu_custom_call.1} parent=5 // pred_check_branch
        %133 = sbr.rel (%p131) target = $region24
      $region23: #{tpu_custom_call.1} parent=5 // pred_region
        // Predicated region
        $region25: #{tpu_custom_call.1} parent=23 // pred_check
          %p134 = pneg %p77
        $region26: #{tpu_custom_call.1} parent=23 // pred_check_branch
          %136 = sbr.rel (%p134) target = $region28
        $region27: #{tpu_custom_call.1} parent=23 // pred_region
          %s137 = sand.u32 %s67, 1
          %s138 = scalar_lea.sflag [#allocation3], %s137
          %s139 = sand.u32 %s67, 1
          %s140 = smul.addr %s139, 64
          %s141 = scalar_lea.vmem [#allocation2], %s140
          %s142 = smul.u32 4, %s15
          %144 = vsyncadd %s138, 0
          %s145 = smul.addr %s142, 2
          %s146 = smul.addr %s145, 8
          %s147 = scalar_lea.hbm %s2, %s146
          %s148 = sshll.u32 %s147, 4
          %s149 = int_to_ptr.hbm [resolvable:$true] %s148
          %s150 = sshll.u32 %s141, 4
          %s151 = int_to_ptr.vmem [resolvable:$true] %s150
          %156 = dma.hbm_to_vmem [thread:$0]  %s149, 1024, %s151, %s138, 128, 128, 8
        $region28: #{tpu_custom_call.1} parent=23 // pred_fallthru
          _
      $region24: #{tpu_custom_call.1} parent=5 // pred_fallthru
        _
      %p157 = scmp.le.s32.totalorder 1, %s15
      %p158 = scmp.lt.s32.totalorder %s15, 3
      %p159 = pnand %p157, %p158
      %p160 = pneg %p159
      // Predicated region
      $region29: #{tpu_custom_call.1} parent=5 // pred_check
        _
      $region30: #{tpu_custom_call.1} parent=5 // pred_check_branch
        %162 = sbr.rel (%p159) target = $region32
      $region31: #{tpu_custom_call.1} parent=5 // pred_region
        %s163 = ssub.s32 %s15, 1
        %s164 = sand.u32 %s70, 1
        %s165 = scalar_lea.sflag [#allocation3], %s164
        %s166 = sand.u32 %s70, 1
        %s167 = smul.addr %s166, 64
        %s168 = scalar_lea.vmem [#allocation2], %s167
        // Predicated region
        $region33: #{tpu_custom_call.1} parent=31 // pred_check
          %p169 = pneg %p83
        $region34: #{tpu_custom_call.1} parent=31 // pred_check_branch
          %171 = sbr.rel (%p169) target = $region36
        $region35: #{tpu_custom_call.1} parent=31 // pred_region
          %173 = dma.done %s165, 1024
        $region36: #{tpu_custom_call.1} parent=31 // pred_fallthru
          _
        %p174 = pneg %p36
        %p175 = pneg %p33
        %p176 = pneg %p57
        %p177 = pneg %p54
        %s178 = sand.u32 %s70, 1
        %s179 = scalar_lea.sflag [#allocation3], %s178
        %s180 = sand.u32 %s70, 1
        %s181 = smul.addr %s180, 64
        %s182 = scalar_lea.vmem [#allocation2], %s181
        %p183 = pneg %p83
        %p184 = pneg %p80
        %p185 = pneg %p109
        %p186 = pneg %p106
        %s187 = sand.u32 %s96, 1
        %s188 = scalar_lea.sflag [#allocation4], %s187
        %s189 = sand.u32 %s96, 1
        %s190 = smul.addr %s189, 128
        %s191 = scalar_lea.vmem [#allocation5], %s190
        %s192 = smul.u32 4, %s20
        %s193 = smul.u32 4, %s20
        %v194 = vld [vmem:[%s0] sm:$0xff]
        %v195 = vld [vmem:[%s0 + $0x8] sm:$0xff]
        %v196 = vld [vmem:[%s0 + $0x10] sm:$0xff]
        %v197 = vld [vmem:[%s0 + $0x18] sm:$0xff]
        %v198 = vld [vmem:[%s1] sm:$0xff]
        %v199 = vld [vmem:[%s1 + $0x8] sm:$0xff]
        %v200 = vld [vmem:[%s168] sm:$0xff]
        %v201 = vld [vmem:[%s168 + $0x8] sm:$0xff]
        %v202 = vld [vmem:[%s168 + $0x10] sm:$0xff]
        %v203 = vld [vmem:[%s168 + $0x18] sm:$0xff]
        %v204 = vld [vmem:[%s168 + $0x20] sm:$0xff]
        %v205 = vld [vmem:[%s168 + $0x28] sm:$0xff]
        %v206 = vld [vmem:[%s168 + $0x30] sm:$0xff]
        %v207 = vld [vmem:[%s168 + $0x38] sm:$0xff]
        %vm208 = vcmask 130048
        %v210 = vsel %vm208, %v200, 0
        %v213 = vsel %vm208, %v201, 0
        %v216 = vsel %vm208, %v202, 0
        %v219 = vsel %vm208, %v203, 0
        %v222 = vsel %vm208, %v204, 0
        %v225 = vsel %vm208, %v205, 0
        %v228 = vsel %vm208, %v206, 0
        %v231 = vsel %vm208, %v207, 0
        %233 = vmatpush.msra.mxu0 0.0
        %234 = vmatpush.msra.mxu0 0.0
        %235 = vmatpush.msra.mxu0 0.0
        %236 = vmatpush.msra.mxu0 0.0
        %237 = vmatpush.msra.mxu0 0.0
        %238 = vmatpush.msra.mxu0 0.0
        %239 = vmatpush.msra.mxu0 0.0
        %240 = vmatpush.msra.mxu0 0.0
        %241 = vmatpush.msra.mxu0 0.0
        %242 = vmatpush.msra.mxu0 0.0
        %243 = vmatpush.msra.mxu0 0.0
        %244 = vmatpush.msra.mxu0 0.0
        %245 = vmatpush.msra.mxu0 0.0
        %246 = vmatpush.msra.mxu0 0.0
        %247 = vmatpush.msra.mxu0 %v199
        %248 = vmatpush.msra.mxu0 %v198
        %249 = vmatmul.f32.gmra.mxu0 %v210
        %v250 = vpop.f32.mrf.mxu0
        %v251 = vadd.f32 0.0, %v250
        %252 = vmatmul.f32.gmra.mxu0 %v213
        %v253 = vpop.f32.mrf.mxu0
        %v254 = vadd.f32 0.0, %v253
        %255 = vmatmul.f32.gmra.mxu0 %v216
        %v256 = vpop.f32.mrf.mxu0
        %v257 = vadd.f32 0.0, %v256
        %258 = vmatmul.f32.gmra.mxu0 %v219
        %v259 = vpop.f32.mrf.mxu0
        %v260 = vadd.f32 0.0, %v259
        %261 = vmatmul.f32.gmra.mxu0 %v222
        %v262 = vpop.f32.mrf.mxu0
        %v263 = vadd.f32 0.0, %v262
        %264 = vmatmul.f32.gmra.mxu0 %v225
        %v265 = vpop.f32.mrf.mxu0
        %v266 = vadd.f32 0.0, %v265
        %267 = vmatmul.f32.gmra.mxu0 %v228
        %v268 = vpop.f32.mrf.mxu0
        %v269 = vadd.f32 0.0, %v268
        %270 = vmatmul.f32.gmra.mxu0 %v231
        %v271 = vpop.f32.mrf.mxu0
        %v272 = vadd.f32 0.0, %v271
        %273 = vdwg.mxu0
        %v275 = vsel %vm208, %v194, 0
        %v278 = vsel %vm208, %v195, 0
        %v281 = vsel %vm208, %v196, 0
        %v284 = vsel %vm208, %v197, 0
        %286 = vmatpush.msra.mxu0 0.0
        %287 = vmatpush.msra.mxu0 0.0
        %288 = vmatpush.msra.mxu0 0.0
        %289 = vmatpush.msra.mxu0 0.0
        %290 = vmatpush.msra.mxu0 0.0
        %291 = vmatpush.msra.mxu0 0.0
        %292 = vmatpush.msra.mxu0 0.0
        %293 = vmatpush.msra.mxu0 0.0
        %294 = vmatpush.msra.mxu0 0.0
        %295 = vmatpush.msra.mxu0 0.0
        %296 = vmatpush.msra.mxu0 0.0
        %297 = vmatpush.msra.mxu0 0.0
        %298 = vmatpush.msra.mxu0 0.0
        %299 = vmatpush.msra.mxu0 0.0
        %300 = vmatpush.msra.mxu0 %v254
        %301 = vmatpush.msra.mxu0 %v251
        %302 = vmatmul.f32.gmra.mxu0 %v275
        %v303 = vpop.f32.mrf.mxu0
        %v304 = vadd.f32 0.0, %v303
        %305 = vmatmul.f32.gmra.mxu0 %v278
        %v306 = vpop.f32.mrf.mxu0
        %v307 = vadd.f32 0.0, %v306
        %308 = vmatmul.f32.gmra.mxu0 %v281
        %v309 = vpop.f32.mrf.mxu0
        %v310 = vadd.f32 0.0, %v309
        %311 = vmatmul.f32.gmra.mxu0 %v284
        %v312 = vpop.f32.mrf.mxu0
        %v313 = vadd.f32 0.0, %v312
        %314 = vdwg.mxu0
        %vm315 = vcmask 261120
        %316 = vst.msk [vmem:[%s191] sm:$0xff] %vm315, %v304
        %317 = vst.msk [vmem:[%s191 + $0x8] sm:$0xff] %vm315, %v307
        %318 = vst.msk [vmem:[%s191 + $0x10] sm:$0xff] %vm315, %v310
        %319 = vst.msk [vmem:[%s191 + $0x18] sm:$0xff] %vm315, %v313
        %320 = vmatpush.msra.mxu0 0.0
        %321 = vmatpush.msra.mxu0 0.0
        %322 = vmatpush.msra.mxu0 0.0
        %323 = vmatpush.msra.mxu0 0.0
        %324 = vmatpush.msra.mxu0 0.0
        %325 = vmatpush.msra.mxu0 0.0
        %326 = vmatpush.msra.mxu0 0.0
        %327 = vmatpush.msra.mxu0 0.0
        %328 = vmatpush.msra.mxu0 0.0
        %329 = vmatpush.msra.mxu0 0.0
        %330 = vmatpush.msra.mxu0 0.0
        %331 = vmatpush.msra.mxu0 0.0
        %332 = vmatpush.msra.mxu0 0.0
        %333 = vmatpush.msra.mxu0 0.0
        %334 = vmatpush.msra.mxu0 %v260
        %335 = vmatpush.msra.mxu0 %v257
        %336 = vmatmul.f32.gmra.mxu0 %v275
        %v337 = vpop.f32.mrf.mxu0
        %v338 = vadd.f32 0.0, %v337
        %339 = vmatmul.f32.gmra.mxu0 %v278
        %v340 = vpop.f32.mrf.mxu0
        %v341 = vadd.f32 0.0, %v340
        %342 = vmatmul.f32.gmra.mxu0 %v281
        %v343 = vpop.f32.mrf.mxu0
        %v344 = vadd.f32 0.0, %v343
        %345 = vmatmul.f32.gmra.mxu0 %v284
        %v346 = vpop.f32.mrf.mxu0
        %v347 = vadd.f32 0.0, %v346
        %348 = vdwg.mxu0
        %s349 = scalar_lea.vmem %s191, 32 [#allocation5]
        %350 = vst.msk [vmem:[%s349] sm:$0xff] %vm315, %v338
        %351 = vst.msk [vmem:[%s349 + $0x8] sm:$0xff] %vm315, %v341
        %352 = vst.msk [vmem:[%s349 + $0x10] sm:$0xff] %vm315, %v344
        %353 = vst.msk [vmem:[%s349 + $0x18] sm:$0xff] %vm315, %v347
        %354 = vmatpush.msra.mxu0 0.0
        %355 = vmatpush.msra.mxu0 0.0
        %356 = vmatpush.msra.mxu0 0.0
        %357 = vmatpush.msra.mxu0 0.0
        %358 = vmatpush.msra.mxu0 0.0
        %359 = vmatpush.msra.mxu0 0.0
        %360 = vmatpush.msra.mxu0 0.0
        %361 = vmatpush.msra.mxu0 0.0
        %362 = vmatpush.msra.mxu0 0.0
        %363 = vmatpush.msra.mxu0 0.0
        %364 = vmatpush.msra.mxu0 0.0
        %365 = vmatpush.msra.mxu0 0.0
        %366 = vmatpush.msra.mxu0 0.0
        %367 = vmatpush.msra.mxu0 0.0
        %368 = vmatpush.msra.mxu0 %v266
        %369 = vmatpush.msra.mxu0 %v263
        %370 = vmatmul.f32.gmra.mxu0 %v275
        %v371 = vpop.f32.mrf.mxu0
        %v372 = vadd.f32 0.0, %v371
        %373 = vmatmul.f32.gmra.mxu0 %v278
        %v374 = vpop.f32.mrf.mxu0
        %v375 = vadd.f32 0.0, %v374
        %376 = vmatmul.f32.gmra.mxu0 %v281
        %v377 = vpop.f32.mrf.mxu0
        %v378 = vadd.f32 0.0, %v377
        %379 = vmatmul.f32.gmra.mxu0 %v284
        %v380 = vpop.f32.mrf.mxu0
        %v381 = vadd.f32 0.0, %v380
        %382 = vdwg.mxu0
        %s383 = scalar_lea.vmem %s191, 64 [#allocation5]
        %384 = vst.msk [vmem:[%s383] sm:$0xff] %vm315, %v372
        %385 = vst.msk [vmem:[%s383 + $0x8] sm:$0xff] %vm315, %v375
        %386 = vst.msk [vmem:[%s383 + $0x10] sm:$0xff] %vm315, %v378
        %387 = vst.msk [vmem:[%s383 + $0x18] sm:$0xff] %vm315, %v381
        %388 = vmatpush.msra.mxu0 0.0
        %389 = vmatpush.msra.mxu0 0.0
        %390 = vmatpush.msra.mxu0 0.0
        %391 = vmatpush.msra.mxu0 0.0
        %392 = vmatpush.msra.mxu0 0.0
        %393 = vmatpush.msra.mxu0 0.0
        %394 = vmatpush.msra.mxu0 0.0
        %395 = vmatpush.msra.mxu0 0.0
        %396 = vmatpush.msra.mxu0 0.0
        %397 = vmatpush.msra.mxu0 0.0
        %398 = vmatpush.msra.mxu0 0.0
        %399 = vmatpush.msra.mxu0 0.0
        %400 = vmatpush.msra.mxu0 0.0
        %401 = vmatpush.msra.mxu0 0.0
        %402 = vmatpush.msra.mxu0 %v272
        %403 = vmatpush.msra.mxu0 %v269
        %404 = vmatmul.f32.gmra.mxu0 %v275
        %v405 = vpop.f32.mrf.mxu0
        %v406 = vadd.f32 0.0, %v405
        %407 = vmatmul.f32.gmra.mxu0 %v278
        %v408 = vpop.f32.mrf.mxu0
        %v409 = vadd.f32 0.0, %v408
        %410 = vmatmul.f32.gmra.mxu0 %v281
        %v411 = vpop.f32.mrf.mxu0
        %v412 = vadd.f32 0.0, %v411
        %413 = vmatmul.f32.gmra.mxu0 %v284
        %v414 = vpop.f32.mrf.mxu0
        %v415 = vadd.f32 0.0, %v414
        %416 = vdwg.mxu0
        %s417 = scalar_lea.vmem %s191, 96 [#allocation5]
        %418 = vst.msk [vmem:[%s417] sm:$0xff] %vm315, %v406
        %419 = vst.msk [vmem:[%s417 + $0x8] sm:$0xff] %vm315, %v409
        %420 = vst.msk [vmem:[%s417 + $0x10] sm:$0xff] %vm315, %v412
        %421 = vst.msk [vmem:[%s417 + $0x18] sm:$0xff] %vm315, %v415
        %s422 = sand.u32 %s96, 1
        %s423 = scalar_lea.sflag [#allocation4], %s422
        %s424 = sand.u32 %s96, 1
        %s425 = smul.addr %s424, 128
        %s426 = scalar_lea.vmem [#allocation5], %s425
        // Predicated region
        $region37: #{tpu_custom_call.1} parent=31 // pred_check
          %p427 = pneg %p106
        $region38: #{tpu_custom_call.1} parent=31 // pred_check_branch
          %429 = sbr.rel (%p427) target = $region40
        $region39: #{tpu_custom_call.1} parent=31 // pred_region
          %s430 = smul.u32 4, %s20
          %432 = vsyncadd %s423, 0
          %s433 = smul.addr %s430, 4
          %s434 = smul.addr %s433, 8
          %s435 = scalar_lea.hbm %s3, %s434
          %s436 = sshll.u32 %s426, 4
          %s437 = int_to_ptr.vmem [resolvable:$true] %s436
          %s438 = sshll.u32 %s435, 4
          %s439 = int_to_ptr.hbm [resolvable:$true] %s438
          %444 = dma.vmem_to_hbm [thread:$0]  %s437, 2048, %s439, %s423, 128, 128, 8
        $region40: #{tpu_custom_call.1} parent=31 // pred_fallthru
          _
      $region32: #{tpu_custom_call.1} parent=5 // pred_fallthru
        _
      %p445 = scmp.le.s32.totalorder 2, %s15
      // Predicated region
      $region41: #{tpu_custom_call.1} parent=5 // pred_check
        %p446 = pneg %p445
      $region42: #{tpu_custom_call.1} parent=5 // pred_check_branch
        %448 = sbr.rel (%p446) target = $region44
      $region43: #{tpu_custom_call.1} parent=5 // pred_region
        %s449 = ssub.s32 %s15, 2
        // Predicated region
        $region45: #{tpu_custom_call.1} parent=43 // pred_check
          %p450 = pneg %p112
        $region46: #{tpu_custom_call.1} parent=43 // pred_check_branch
          %452 = sbr.rel (%p450) target = $region48
        $region47: #{tpu_custom_call.1} parent=43 // pred_region
          %s453 = sand.u32 %s97, 1
          %s454 = scalar_lea.sflag [#allocation4], %s453
          %s455 = sand.u32 %s97, 1
          %s456 = smul.addr %s455, 128
          %s457 = scalar_lea.vmem [#allocation5], %s456
          %459 = dma.done %s454, 2048
        $region48: #{tpu_custom_call.1} parent=43 // pred_fallthru
          _
      $region44: #{tpu_custom_call.1} parent=5 // pred_fallthru
        _
    $region6: #{tpu_custom_call.1} parent=1 // loop_footer
      %s19 = sadd.s32 1, %s15
    $region7: #{tpu_custom_call.1} parent=1 // loop_footer_branch
      %14 = sbr.rel target = $region3
    $region8: #{tpu_custom_call.1} parent=1 // loop_exit
      _
    %460 = vsyncpa [#allocation3], 1
    %s461 = scalar_lea.sflag [#allocation3], 1
    %462 = vsyncpa %s461, 1
    %463 = vsyncpa [#allocation4], 1
    %s464 = scalar_lea.sflag [#allocation4], 1
    %465 = vsyncpa %s464, 1

</llo_original>
